<compile_context>
chip_gen: v5e
topology: v5e:2x2
jax: 0.10.0
libtpu: 0.0.40
codegen_flags: <defaults>
</compile_context>

<pallas_src>
import functools
import math

import jax
import jax.numpy as jnp
from jax.experimental import pallas as pl
from jax.experimental.pallas import tpu as pltpu


def _upsample_rows_kernel(x_ref, o_ref, *, s, w, g):
    """x_ref: (TR, g*w)  ->  o_ref: (TR, g*s*w*s).

    Each kernel row packs g consecutive input image-rows; for input row gi
    within the group:
        o[r, ((gi*s + i)*w + x)*s + j] = x[r, gi*w + x]   for i, j in [0, s).
    Pure VPU/XLU copies -- no MXU.
    """
    if s == 1:
        o_ref[...] = x_ref[...]
        return

    tr = x_ref.shape[0]

    if g == 1 and (w * s) % 128 == 0:
        # Hot path (realistic W): one lane interleave, then s lane-dense
        # sliced stores (each slice is w*s wide, a multiple of 128).  No
        # concatenate intermediate -> minimal extra VMEM/vreg traffic.
        x = x_ref[...]                                          # (TR, w)
        xw = jnp.broadcast_to(x[:, :, None], (tr, w, s)).reshape(tr, w * s)
        for i in range(s):
            o_ref[:, i * w * s:(i + 1) * w * s] = xw
    else:
        # Small-W path: the wrapper grouped g input rows per kernel row so the
        # full output row is lane-dense; build it once and store once.
        x = x_ref[...]                                          # (TR, g*w)
        parts = []
        for gi in range(g):
            xg = x[:, gi * w:(gi + 1) * w]                      # (TR, w)
            xw = jnp.broadcast_to(xg[:, :, None], (tr, w, s)).reshape(tr, w * s)
            parts.extend([xw] * s)
        o_ref[...] = jnp.concatenate(parts, axis=1)


def _pick_row_block(n_rows, out_row_bytes, sub,
                    target_block_bytes=8 << 20, min_steps=8):
    """Row-block (sublane) size: ~target_block_bytes of OUTPUT per block,
    aligned to the dtype's sublane multiple, but keeping >= min_steps grid
    steps when the array is large enough (v7x dual-TC + pipelining).  The
    grid uses pl.cdiv, so the last block may be ragged (Pallas masks it)."""
    tr = (target_block_bytes // max(1, out_row_bytes)) // sub * sub
    tr = max(sub, tr)
    if n_rows >= min_steps * sub:
        tr = min(tr, max(sub, (n_rows // min_steps) // sub * sub))
    # Never bigger than the sublane-padded array itself.
    tr = min(tr, pl.cdiv(n_rows, sub) * sub)
    return tr


def upsample_nearest(x, scale_factor=2):
    """Pallas TPU equivalent of nn.Upsample(scale_factor, mode='nearest')
    for 4-D NCHW input with an integer scale factor."""
    # TODO(synk): only 4-D NCHW, mode='nearest', integer scale_factor is
    # implemented (no `size=`, no linear/bilinear/bicubic/trilinear modes,
    # no align_corners, no 3-D/5-D inputs).
    s = int(scale_factor)
    assert s >= 1 and float(scale_factor) == float(s), "integer scale factors only"
    assert x.ndim == 4, "expected NCHW input"
    n, c, h, w = x.shape
    if s == 1:
        return x
    ho, wo = h * s, w * s

    rows = n * c * h                     # fold N, C, H onto the sublane axis
    out_row = s * w * s                  # one input row -> s output rows, flat
    itemsize = jnp.dtype(x.dtype).itemsize
    sub = {4: 8, 2: 16, 1: 32}.get(itemsize, 8)   # dtype-aware sublane multiple

    # Group k consecutive input rows per kernel row when the per-row output
    # width is not lane-dense (multiple of 128), so stores are unmasked vst.
    g = 1
    if out_row % 128 != 0:
        k = 128 // math.gcd(out_row, 128)
        if k <= 8 and rows % k == 0:
            g = k
    rows_g = rows // g
    w_g = g * w
    out_row_g = g * out_row

    x2 = x.reshape(rows_g, w_g)          # contiguous reshape (free)

    tr = _pick_row_block(rows_g, out_row_g * itemsize, sub)
    grid = (pl.cdiv(rows_g, tr),)

    in_block = tr * w_g * itemsize
    out_block = tr * out_row_g * itemsize
    # Double-buffered blocks + in-kernel interleave intermediates must fit
    # v7x's 64 MiB physical VMEM; v5e/v6e (128 MiB) simply get more headroom.
    vmem_limit = int(min(44 << 20, max(16 << 20, 4 * (in_block + out_block))))

    out2 = pl.pallas_call(
        functools.partial(_upsample_rows_kernel, s=s, w=w, g=g),
        out_shape=jax.ShapeDtypeStruct((rows_g, out_row_g), x.dtype),
        grid_spec=pltpu.PrefetchScalarGridSpec(
            num_scalar_prefetch=0,
            grid=grid,
            in_specs=[pl.BlockSpec((tr, w_g), lambda t: (t, 0))],
            out_specs=pl.BlockSpec((tr, out_row_g), lambda t: (t, 0)),
        ),
        compiler_params=pltpu.CompilerParams(
            dimension_semantics=("parallel",),
            vmem_limit_bytes=vmem_limit,
        ),
    )(x2)

    # (rows_g, g*s*W*s) row-major == (N, C, H, s, W, s) row-major == NCHW out.
    return out2.reshape(n, c, ho, wo)


def _reference_nearest(x, s):
    # Pure-JAX reference matching PyTorch nearest (src = floor(dst / scale)).
    return jnp.repeat(jnp.repeat(x, s, axis=2), s, axis=3)


if __name__ == "__main__":
    key = jax.random.PRNGKey(0)
    N, C, H, W = 2, 4, 16, 16
    SCALE = 2
    x = jax.random.normal(key, (N, C, H, W), dtype=jnp.float32)

    y = jax.block_until_ready(upsample_nearest(x, scale_factor=SCALE))

    y_ref = _reference_nearest(x, SCALE)
    assert y.shape == (N, C, H * SCALE, W * SCALE), y.shape
    assert bool(jnp.array_equal(y, y_ref)), "mismatch vs reference nearest upsample"

    print("KERNEL_OK")
</pallas_src>

<mosaic_0001>
module attributes {stable_mosaic.version = 11 : i64} {
  func.func @_upsample_rows_kernel(%arg0: i32, %arg1: memref<8x32xf32, #tpu.memory_space<vmem>>, %arg2: memref<8x128xf32, #tpu.memory_space<vmem>>) attributes {dimension_semantics = [#tpu.dimension_semantics<parallel>], iteration_bounds = array<i64: 8>, scalar_prefetch = 0 : i64, scratch_operands = 0 : i64, tpu.core_type = #tpu.core_type<tc>, window_params = [{transform_indices = @transform_0, window_bounds = array<i64: 8, 32>}, {transform_indices = @transform_1, window_bounds = array<i64: 8, 128>}]} {
    %c0 = arith.constant 0 : index
    %c0_0 = arith.constant 0 : index
    %0 = vector.load %arg1[%c0, %c0_0] : memref<8x32xf32, #tpu.memory_space<vmem>>, vector<8x32xf32>
    %1 = vector.extract_strided_slice %0 {offsets = [0, 0], sizes = [8, 16], strides = [1, 1]} : vector<8x32xf32> to vector<8x16xf32>
    %2 = vector.shape_cast %1 : vector<8x16xf32> to vector<8x16x1xf32>
    %3 = vector.shape_cast %2 : vector<8x16x1xf32> to vector<8x16x1xf32>
    %4 = vector.broadcast %3 : vector<8x16x1xf32> to vector<8x16x2xf32>
    %5 = vector.shape_cast %4 : vector<8x16x2xf32> to vector<8x32xf32>
    %6 = vector.extract_strided_slice %0 {offsets = [0, 16], sizes = [8, 16], strides = [1, 1]} : vector<8x32xf32> to vector<8x16xf32>
    %7 = vector.shape_cast %6 : vector<8x16xf32> to vector<8x16x1xf32>
    %8 = vector.shape_cast %7 : vector<8x16x1xf32> to vector<8x16x1xf32>
    %9 = vector.broadcast %8 : vector<8x16x1xf32> to vector<8x16x2xf32>
    %10 = vector.shape_cast %9 : vector<8x16x2xf32> to vector<8x32xf32>
    %11 = tpu.concatenate %5, %5, %10, %10 in 1 : vector<8x32xf32>, vector<8x32xf32>, vector<8x32xf32>, vector<8x32xf32> -> vector<8x128xf32>
    %c0_1 = arith.constant 0 : index
    %c0_2 = arith.constant 0 : index
    %12 = vector.load %arg2[%c0_1, %c0_2] : memref<8x128xf32, #tpu.memory_space<vmem>>, vector<8x128xf32>
    tpu.vector_store %arg2[%c0_1, %c0_2], %11 {strides = array<i32>} : memref<8x128xf32, #tpu.memory_space<vmem>>, vector<8x128xf32>,
    return
  }
  func.func @transform_0(%arg0: i32) -> (i32, i32) {
    %c0_i32 = arith.constant 0 : i32
    %c0_i32_0 = arith.constant 0 : i32
    return %arg0, %c0_i32 : i32, i32
  }
  func.func @transform_1(%arg0: i32) -> (i32, i32) {
    %c0_i32 = arith.constant 0 : i32
    %c0_i32_0 = arith.constant 0 : i32
    return %arg0, %c0_i32 : i32, i32
  }
}

</mosaic_0001>

<llo_original>
// kernel: tpu_custom_call.1
$region0: #{tpu_custom_call.1}
  #allocation0 [shape = 'u32[]', space=smem, size = 0x4, offset = 0x4, fixed_abs, tag = 'smem constant byte address 0x4 - core index']
  #allocation1 [shape = 'u32[72,128]{1,0:T(1,128)}', space=vmem, size = 0x9000, scoped, tag = 'internal scratch']
  %s0 = inlined_call_operand.vmem [shape: f32[64,32], index: 0, kind: input, shape index: {}]
  %s1 = inlined_call_operand.hbm [shape: f32[64,128], index: 1, kind: output, shape index: {}]
  %s2 = sld [smem:[#allocation0]]
  $region37: #{tpu_custom_call.1} parent=0
    _
  %s4 = ssub.s32 1, %s2
  %s5 = scalar_select 0, %s4, %s2
  $region1: #{tpu_custom_call.1} parent=0
    #allocation2 [shape = 'u8[8192]{0}', space=vmem, size = 0x2000, scoped, tag = 'output window, operand 0']
    #allocation3 [shape = 's32[2]{0}', space=sflag, size = 0x8, scoped, tag = 'scoped memory for tpu_custom_call.1']
    %6 = vsyncpa [#allocation3], 0
    %s7 = scalar_lea.sflag [#allocation3], 1
    %8 = vsyncpa %s7, 0
    loop: start=0, step=1, limit=10
    $region2: #{tpu_custom_call.1} parent=1 // loop_pre_header
      _
    $region3: #{tpu_custom_call.1} parent=1 // loop_header
      %s10 = sphi 0, %s14
      %p11 = scmp.ge.s32.totalorder %s10, 10
      %s20 = sphi 0, %s22
      %s23 = sphi 0, %s20
      %s24 = sphi 0, %s23
      %s40 = sphi 0, %s24
      %s46 = sphi 0, %s48
      %s49 = sphi 0, %s46
      %s50 = sphi 0, %s49
      %s66 = sphi 0, %s50
    $region4: #{tpu_custom_call.1} parent=1 // loop_header_branch
      %13 = sbr.rel (%p11) target = $region8
    $region5: #{tpu_custom_call.1} parent=1 // loop_body
      %s15 = ssub.s32 %s10, 1
      %s16 = ssub.s32 %s10, 2
      %s17 = sadd.s32 %s10, 1
      %s18 = ssub.s32 %s10, %s17
      %p19 = scmp.eq.s32.totalorder %s18, 0
      %s21 = sadd.s32 %s20, 1
      %s22 = scalar_select %p19, %s20, %s21
      %p25 = pneg %p19
      %p26 = scmp.eq.s32.totalorder %s10, 7
      %p27 = por %p25, %p26
      %p28 = scmp.ne.s32.totalorder %s20, %s23
      %p29 = scmp.eq.s32.totalorder %s10, 0
      %p30 = por %p28, %p29
      %p31 = scmp.ne.s32.totalorder %s20, %s23
      %p32 = scmp.eq.s32.totalorder %s15, 7
      %p33 = por %p31, %p32
      %p34 = scmp.ne.s32.totalorder %s23, %s24
      %p35 = scmp.eq.s32.totalorder %s15, 0
      %p36 = por %p34, %p35
      %p37 = scmp.ne.s32.totalorder %s23, %s24
      %p38 = scmp.eq.s32.totalorder %s16, 7
      %p39 = por %p37, %p38
      %p41 = scmp.ne.s32.totalorder %s24, %s40
      %p42 = scmp.eq.s32.totalorder %s16, 0
      %p43 = por %p41, %p42
      %s44 = ssub.s32 %s10, %s17
      %p45 = scmp.eq.s32.totalorder %s44, 0
      %s47 = sadd.s32 %s46, 1
      %s48 = scalar_select %p45, %s46, %s47
      %p51 = pneg %p45
      %p52 = scmp.eq.s32.totalorder %s10, 7
      %p53 = por %p51, %p52
      %p54 = scmp.ne.s32.totalorder %s46, %s49
      %p55 = scmp.eq.s32.totalorder %s10, 0
      %p56 = por %p54, %p55
      %p57 = scmp.ne.s32.totalorder %s46, %s49
      %p58 = scmp.eq.s32.totalorder %s15, 7
      %p59 = por %p57, %p58
      %p60 = scmp.ne.s32.totalorder %s49, %s50
      %p61 = scmp.eq.s32.totalorder %s15, 0
      %p62 = por %p60, %p61
      %p63 = scmp.ne.s32.totalorder %s49, %s50
      %p64 = scmp.eq.s32.totalorder %s16, 7
      %p65 = por %p63, %p64
      %p67 = scmp.ne.s32.totalorder %s50, %s66
      %p68 = scmp.eq.s32.totalorder %s16, 0
      %p69 = por %p67, %p68
      %p70 = scmp.le.s32.totalorder 1, %s10
      %p71 = scmp.lt.s32.totalorder %s10, 9
      %p72 = pnand %p70, %p71
      %p73 = pneg %p72
      // Predicated region
      $region9: #{tpu_custom_call.1} parent=5 // pred_check
        _
      $region10: #{tpu_custom_call.1} parent=5 // pred_check_branch
        %75 = sbr.rel (%p72) target = $region12
      $region11: #{tpu_custom_call.1} parent=5 // pred_region
        %s76 = ssub.s32 %s10, 1
      $region12: #{tpu_custom_call.1} parent=5 // pred_fallthru
        _
      %p77 = scmp.lt.s32.totalorder %s10, 8
      // Predicated region
      $region13: #{tpu_custom_call.1} parent=5 // pred_check
        %p78 = pneg %p77
      $region14: #{tpu_custom_call.1} parent=5 // pred_check_branch
        %80 = sbr.rel (%p78) target = $region16
      $region15: #{tpu_custom_call.1} parent=5 // pred_region
        // Predicated region
        $region17: #{tpu_custom_call.1} parent=15 // pred_check
          %p81 = pneg %p30
        $region18: #{tpu_custom_call.1} parent=15 // pred_check_branch
          %83 = sbr.rel (%p81) target = $region20
        $region19: #{tpu_custom_call.1} parent=15 // pred_region
          %p84 = scmp.lt.s32.totalorder %s10, 7
          %s85 = scalar_select %p84, %s10, 7
          %s86 = smul.addr %s85, 8
          %s87 = scalar_lea.vmem %s0, %s86
        $region20: #{tpu_custom_call.1} parent=15 // pred_fallthru
          _
      $region16: #{tpu_custom_call.1} parent=5 // pred_fallthru
        _
      %p88 = scmp.le.s32.totalorder 1, %s10
      %p89 = scmp.lt.s32.totalorder %s10, 9
      %p90 = pnand %p88, %p89
      %p91 = pneg %p90
      // Predicated region
      $region21: #{tpu_custom_call.1} parent=5 // pred_check
        _
      $region22: #{tpu_custom_call.1} parent=5 // pred_check_branch
        %93 = sbr.rel (%p90) target = $region24
      $region23: #{tpu_custom_call.1} parent=5 // pred_region
        %s94 = ssub.s32 %s10, 1
        %p95 = scmp.lt.s32.totalorder %s15, 7
        %s96 = scalar_select %p95, %s15, 7
        %s97 = smul.addr %s96, 8
        %s98 = scalar_lea.vmem %s0, %s97
        %p99 = pneg %p36
        %p100 = pneg %p33
        %p101 = pneg %p62
        %p102 = pneg %p59
        %s103 = sand.u32 %s49, 1
        %s104 = scalar_lea.sflag [#allocation3], %s103
        %s105 = sand.u32 %s49, 1
        %s106 = smul.addr %s105, 8
        %s107 = scalar_lea.vmem [#allocation2], %s106
        %p108 = scmp.lt.s32.totalorder %s15, 7
        %s109 = scalar_select %p108, %s15, 7
        %s110 = smul.addr %s109, 8
        %s111 = scalar_lea.vmem %s0, %s110
        %v112 = vld [vmem:[%s111] sm:$0xff]
        %v113 = vperm.slane %v112, 0
        %v114 = vlaneseq
        %v115 = vshrl.u32 %v114, 7
        %117 = vset.pattern.permute.xlu0 %v115
        %118 = vperm.xlu0 %117, %v113
        %v119 = vpop.permute.xlu0 %118
        %v120 = vlaneseq
        %v121 = vshrl.u32 %v120, 7
        %v122 = vadd.s32 %v121, 8
        %123 = vset.pattern.permute.xlu0 %v122
        %124 = vperm.xlu0 %123, %v113
        %v125 = vpop.permute.xlu0 %124
        %v126 = vperm.slane %v112, 1
        %v127 = vlaneseq
        %v128 = vshrl.u32 %v127, 7
        %130 = vset.pattern.permute.xlu0 %v128
        %131 = vperm.xlu0 %130, %v126
        %v132 = vpop.permute.xlu0 %131
        %v133 = vlaneseq
        %v134 = vshrl.u32 %v133, 7
        %v135 = vadd.s32 %v134, 8
        %136 = vset.pattern.permute.xlu0 %v135
        %137 = vperm.xlu0 %136, %v126
        %v138 = vpop.permute.xlu0 %137
        %v139 = vperm.slane %v112, 2
        %v140 = vlaneseq
        %v141 = vshrl.u32 %v140, 7
        %143 = vset.pattern.permute.xlu0 %v141
        %144 = vperm.xlu0 %143, %v139
        %v145 = vpop.permute.xlu0 %144
        %v146 = vlaneseq
        %v147 = vshrl.u32 %v146, 7
        %v148 = vadd.s32 %v147, 8
        %149 = vset.pattern.permute.xlu0 %v148
        %150 = vperm.xlu0 %149, %v139
        %v151 = vpop.permute.xlu0 %150
        %v152 = vperm.slane %v112, 3
        %v153 = vlaneseq
        %v154 = vshrl.u32 %v153, 7
        %156 = vset.pattern.permute.xlu0 %v154
        %157 = vperm.xlu0 %156, %v152
        %v158 = vpop.permute.xlu0 %157
        %v159 = vlaneseq
        %v160 = vshrl.u32 %v159, 7
        %v161 = vadd.s32 %v160, 8
        %162 = vset.pattern.permute.xlu0 %v161
        %163 = vperm.xlu0 %162, %v152
        %v164 = vpop.permute.xlu0 %163
        %v165 = vperm.slane %v112, 4
        %v166 = vlaneseq
        %v167 = vshrl.u32 %v166, 7
        %169 = vset.pattern.permute.xlu0 %v167
        %170 = vperm.xlu0 %169, %v165
        %v171 = vpop.permute.xlu0 %170
        %v172 = vlaneseq
        %v173 = vshrl.u32 %v172, 7
        %v174 = vadd.s32 %v173, 8
        %175 = vset.pattern.permute.xlu0 %v174
        %176 = vperm.xlu0 %175, %v165
        %v177 = vpop.permute.xlu0 %176
        %v178 = vperm.slane %v112, 5
        %v179 = vlaneseq
        %v180 = vshrl.u32 %v179, 7
        %182 = vset.pattern.permute.xlu0 %v180
        %183 = vperm.xlu0 %182, %v178
        %v184 = vpop.permute.xlu0 %183
        %v185 = vlaneseq
        %v186 = vshrl.u32 %v185, 7
        %v187 = vadd.s32 %v186, 8
        %188 = vset.pattern.permute.xlu0 %v187
        %189 = vperm.xlu0 %188, %v178
        %v190 = vpop.permute.xlu0 %189
        %v191 = vperm.slane %v112, 6
        %v192 = vlaneseq
        %v193 = vshrl.u32 %v192, 7
        %195 = vset.pattern.permute.xlu0 %v193
        %196 = vperm.xlu0 %195, %v191
        %v197 = vpop.permute.xlu0 %196
        %v198 = vlaneseq
        %v199 = vshrl.u32 %v198, 7
        %v200 = vadd.s32 %v199, 8
        %201 = vset.pattern.permute.xlu0 %v200
        %202 = vperm.xlu0 %201, %v191
        %v203 = vpop.permute.xlu0 %202
        %v204 = vperm.slane %v112, 7
        %v205 = vlaneseq
        %v206 = vshrl.u32 %v205, 7
        %208 = vset.pattern.permute.xlu0 %v206
        %209 = vperm.xlu0 %208, %v204
        %v210 = vpop.permute.xlu0 %209
        %v211 = vlaneseq
        %v212 = vshrl.u32 %v211, 7
        %v213 = vadd.s32 %v212, 8
        %214 = vset.pattern.permute.xlu0 %v213
        %215 = vperm.xlu0 %214, %v204
        %v216 = vpop.permute.xlu0 %215
        %v217 = vrot.slane %v145, 4
        %vm218 = vcmask 1047556
        %v219 = vsel %vm218, %v217, %v119
        %v220 = vrot.slane %v119, 4
        %v221 = vsel %vm218, %v145, %v220
        %v223 = vunpack.c.l.s4 1983009808
        %v224 = vunpack.c.0.s8 %v223
        %v225 = vperm.slane %v219, %v224
        %v227 = vunpack.c.l.s4 1983009808
        %v228 = vunpack.c.0.s8 %v227
        %v229 = vperm.slane %v221, %v228
        %v230 = vrot.slane %v158, 4
        %v231 = vsel %vm218, %v230, %v132
        %v232 = vrot.slane %v132, 4
        %v233 = vsel %vm218, %v158, %v232
        %v235 = vunpack.c.l.s4 1983009808
        %v236 = vunpack.c.0.s8 %v235
        %v237 = vperm.slane %v231, %v236
        %v239 = vunpack.c.l.s4 1983009808
        %v240 = vunpack.c.0.s8 %v239
        %v241 = vperm.slane %v233, %v240
        %v242 = vrot.slane %v197, 4
        %v243 = vsel %vm218, %v242, %v171
        %v244 = vrot.slane %v171, 4
        %v245 = vsel %vm218, %v197, %v244
        %v247 = vunpack.c.l.s4 1983009808
        %v248 = vunpack.c.0.s8 %v247
        %v249 = vperm.slane %v243, %v248
        %v251 = vunpack.c.l.s4 1983009808
        %v252 = vunpack.c.0.s8 %v251
        %v253 = vperm.slane %v245, %v252
        %v254 = vrot.slane %v210, 4
        %v255 = vsel %vm218, %v254, %v184
        %v256 = vrot.slane %v184, 4
        %v257 = vsel %vm218, %v210, %v256
        %v259 = vunpack.c.l.s4 1983009808
        %v260 = vunpack.c.0.s8 %v259
        %v261 = vperm.slane %v255, %v260
        %v263 = vunpack.c.l.s4 1983009808
        %v264 = vunpack.c.0.s8 %v263
        %v265 = vperm.slane %v257, %v264
        %v266 = vrot.slane %v237, 4
        %v267 = vsel %vm218, %v266, %v225
        %v268 = vrot.slane %v225, 4
        %v269 = vsel %vm218, %v237, %v268
        %v271 = vunpack.c.l.s4 1934713408
        %v272 = vunpack.c.0.s8 %v271
        %v273 = vperm.slane %v267, %v272
        %v275 = vunpack.c.l.s4 1934713408
        %v276 = vunpack.c.0.s8 %v275
        %v277 = vperm.slane %v269, %v276
        %v278 = vrot.slane %v241, 4
        %v279 = vsel %vm218, %v278, %v229
        %v280 = vrot.slane %v229, 4
        %v281 = vsel %vm218, %v241, %v280
        %v283 = vunpack.c.l.s4 1934713408
        %v284 = vunpack.c.0.s8 %v283
        %v285 = vperm.slane %v279, %v284
        %v287 = vunpack.c.l.s4 1934713408
        %v288 = vunpack.c.0.s8 %v287
        %v289 = vperm.slane %v281, %v288
        %v290 = vrot.slane %v261, 4
        %v291 = vsel %vm218, %v290, %v249
        %v292 = vrot.slane %v249, 4
        %v293 = vsel %vm218, %v261, %v292
        %v295 = vunpack.c.l.s4 1934713408
        %v296 = vunpack.c.0.s8 %v295
        %v297 = vperm.slane %v291, %v296
        %v299 = vunpack.c.l.s4 1934713408
        %v300 = vunpack.c.0.s8 %v299
        %v301 = vperm.slane %v293, %v300
        %v302 = vrot.slane %v265, 4
        %v303 = vsel %vm218, %v302, %v253
        %v304 = vrot.slane %v253, 4
        %v305 = vsel %vm218, %v265, %v304
        %v307 = vunpack.c.l.s4 1934713408
        %v308 = vunpack.c.0.s8 %v307
        %v309 = vperm.slane %v303, %v308
        %v311 = vunpack.c.l.s4 1934713408
        %v312 = vunpack.c.0.s8 %v311
        %v313 = vperm.slane %v305, %v312
        %v314 = vrot.slane %v297, 4
        %v315 = vsel %vm218, %v314, %v273
        %v316 = vrot.slane %v273, 4
        %v317 = vsel %vm218, %v297, %v316
        %v318 = vrot.slane %v301, 4
        %v319 = vsel %vm218, %v318, %v277
        %v320 = vrot.slane %v277, 4
        %v321 = vsel %vm218, %v301, %v320
        %v322 = vrot.slane %v309, 4
        %v323 = vsel %vm218, %v322, %v285
        %v324 = vrot.slane %v285, 4
        %v325 = vsel %vm218, %v309, %v324
        %v326 = vrot.slane %v313, 4
        %v327 = vsel %vm218, %v326, %v289
        %v328 = vrot.slane %v289, 4
        %v329 = vsel %vm218, %v313, %v328
        %v330 = vrot.slane %v151, 4
        %v331 = vsel %vm218, %v330, %v125
        %v332 = vrot.slane %v125, 4
        %v333 = vsel %vm218, %v151, %v332
        %v335 = vunpack.c.l.s4 1983009808
        %v336 = vunpack.c.0.s8 %v335
        %v337 = vperm.slane %v331, %v336
        %v339 = vunpack.c.l.s4 1983009808
        %v340 = vunpack.c.0.s8 %v339
        %v341 = vperm.slane %v333, %v340
        %v342 = vrot.slane %v164, 4
        %v343 = vsel %vm218, %v342, %v138
        %v344 = vrot.slane %v138, 4
        %v345 = vsel %vm218, %v164, %v344
        %v347 = vunpack.c.l.s4 1983009808
        %v348 = vunpack.c.0.s8 %v347
        %v349 = vperm.slane %v343, %v348
        %v351 = vunpack.c.l.s4 1983009808
        %v352 = vunpack.c.0.s8 %v351
        %v353 = vperm.slane %v345, %v352
        %v354 = vrot.slane %v203, 4
        %v355 = vsel %vm218, %v354, %v177
        %v356 = vrot.slane %v177, 4
        %v357 = vsel %vm218, %v203, %v356
        %v359 = vunpack.c.l.s4 1983009808
        %v360 = vunpack.c.0.s8 %v359
        %v361 = vperm.slane %v355, %v360
        %v363 = vunpack.c.l.s4 1983009808
        %v364 = vunpack.c.0.s8 %v363
        %v365 = vperm.slane %v357, %v364
        %v366 = vrot.slane %v216, 4
        %v367 = vsel %vm218, %v366, %v190
        %v368 = vrot.slane %v190, 4
        %v369 = vsel %vm218, %v216, %v368
        %v371 = vunpack.c.l.s4 1983009808
        %v372 = vunpack.c.0.s8 %v371
        %v373 = vperm.slane %v367, %v372
        %v375 = vunpack.c.l.s4 1983009808
        %v376 = vunpack.c.0.s8 %v375
        %v377 = vperm.slane %v369, %v376
        %v378 = vrot.slane %v349, 4
        %v379 = vsel %vm218, %v378, %v337
        %v380 = vrot.slane %v337, 4
        %v381 = vsel %vm218, %v349, %v380
        %v383 = vunpack.c.l.s4 1934713408
        %v384 = vunpack.c.0.s8 %v383
        %v385 = vperm.slane %v379, %v384
        %v387 = vunpack.c.l.s4 1934713408
        %v388 = vunpack.c.0.s8 %v387
        %v389 = vperm.slane %v381, %v388
        %v390 = vrot.slane %v353, 4
        %v391 = vsel %vm218, %v390, %v341
        %v392 = vrot.slane %v341, 4
        %v393 = vsel %vm218, %v353, %v392
        %v395 = vunpack.c.l.s4 1934713408
        %v396 = vunpack.c.0.s8 %v395
        %v397 = vperm.slane %v391, %v396
        %v399 = vunpack.c.l.s4 1934713408
        %v400 = vunpack.c.0.s8 %v399
        %v401 = vperm.slane %v393, %v400
        %v402 = vrot.slane %v373, 4
        %v403 = vsel %vm218, %v402, %v361
        %v404 = vrot.slane %v361, 4
        %v405 = vsel %vm218, %v373, %v404
        %v407 = vunpack.c.l.s4 1934713408
        %v408 = vunpack.c.0.s8 %v407
        %v409 = vperm.slane %v403, %v408
        %v411 = vunpack.c.l.s4 1934713408
        %v412 = vunpack.c.0.s8 %v411
        %v413 = vperm.slane %v405, %v412
        %v414 = vrot.slane %v377, 4
        %v415 = vsel %vm218, %v414, %v365
        %v416 = vrot.slane %v365, 4
        %v417 = vsel %vm218, %v377, %v416
        %v419 = vunpack.c.l.s4 1934713408
        %v420 = vunpack.c.0.s8 %v419
        %v421 = vperm.slane %v415, %v420
        %v423 = vunpack.c.l.s4 1934713408
        %v424 = vunpack.c.0.s8 %v423
        %v425 = vperm.slane %v417, %v424
        %v426 = vrot.slane %v409, 4
        %v427 = vsel %vm218, %v426, %v385
        %v428 = vrot.slane %v385, 4
        %v429 = vsel %vm218, %v409, %v428
        %v430 = vrot.slane %v413, 4
        %v431 = vsel %vm218, %v430, %v389
        %v432 = vrot.slane %v389, 4
        %v433 = vsel %vm218, %v413, %v432
        %v434 = vrot.slane %v421, 4
        %v435 = vsel %vm218, %v434, %v397
        %v436 = vrot.slane %v397, 4
        %v437 = vsel %vm218, %v421, %v436
        %v438 = vrot.slane %v425, 4
        %v439 = vsel %vm218, %v438, %v401
        %v440 = vrot.slane %v401, 4
        %v441 = vsel %vm218, %v425, %v440
        %443 = vrot.lane.b32.xlu0 %v317, 2
        %v444 = vpop.permute.xlu0 %443
        %447 = vrot.lane.b32.xlu0 %v319, 4
        %v448 = vpop.permute.xlu0 %447
        %451 = vrot.lane.b32.xlu0 %v321, 6
        %v452 = vpop.permute.xlu0 %451
        %455 = vrot.lane.b32.xlu0 %v323, 8
        %v456 = vpop.permute.xlu0 %455
        %459 = vrot.lane.b32.xlu0 %v325, 10
        %v460 = vpop.permute.xlu0 %459
        %463 = vrot.lane.b32.xlu0 %v327, 12
        %v464 = vpop.permute.xlu0 %463
        %467 = vrot.lane.b32.xlu0 %v329, 14
        %v468 = vpop.permute.xlu0 %467
        %471 = vrot.lane.b32.xlu0 %v427, 16
        %v472 = vpop.permute.xlu0 %471
        %475 = vrot.lane.b32.xlu0 %v429, 18
        %v476 = vpop.permute.xlu0 %475
        %479 = vrot.lane.b32.xlu0 %v431, 20
        %v480 = vpop.permute.xlu0 %479
        %483 = vrot.lane.b32.xlu0 %v433, 22
        %v484 = vpop.permute.xlu0 %483
        %487 = vrot.lane.b32.xlu0 %v435, 24
        %v488 = vpop.permute.xlu0 %487
        %491 = vrot.lane.b32.xlu0 %v437, 26
        %v492 = vpop.permute.xlu0 %491
        %495 = vrot.lane.b32.xlu0 %v439, 28
        %v496 = vpop.permute.xlu0 %495
        %499 = vrot.lane.b32.xlu0 %v441, 30
        %v500 = vpop.permute.xlu0 %499
        %vm502 = vcmask 15360
        %v503 = vsel %vm502, %v315, %v444
        %vm504 = vcmask 31744
        %v505 = vsel %vm504, %v503, %v448
        %vm506 = vcmask 48128
        %v507 = vsel %vm506, %v505, %v452
        %vm508 = vcmask 64512
        %v509 = vsel %vm508, %v507, %v456
        %vm510 = vcmask 80896
        %v511 = vsel %vm510, %v509, %v460
        %vm512 = vcmask 97280
        %v513 = vsel %vm512, %v511, %v464
        %vm514 = vcmask 113664
        %v515 = vsel %vm514, %v513, %v468
        %vm516 = vcmask 130048
        %v517 = vsel %vm516, %v515, %v472
        %vm518 = vcmask 146432
        %v519 = vsel %vm518, %v517, %v476
        %vm520 = vcmask 162816
        %v521 = vsel %vm520, %v519, %v480
        %vm522 = vcmask 179200
        %v523 = vsel %vm522, %v521, %v484
        %vm524 = vcmask 195584
        %v525 = vsel %vm524, %v523, %v488
        %vm526 = vcmask 211968
        %v527 = vsel %vm526, %v525, %v492
        %vm528 = vcmask 228352
        %v529 = vsel %vm528, %v527, %v496
        %vm530 = vcmask 244736
        %v531 = vsel %vm530, %v529, %v500
        %v532 = vlaneseq
        %v533 = vshrl.u32 %v532, 7
        %v534 = vadd.s32 %v533, 16
        %535 = vset.pattern.permute.xlu0 %v534
        %536 = vperm.xlu0 %535, %v113
        %v537 = vpop.permute.xlu0 %536
        %v538 = vlaneseq
        %v539 = vshrl.u32 %v538, 7
        %v540 = vadd.s32 %v539, 24
        %541 = vset.pattern.permute.xlu0 %v540
        %542 = vperm.xlu0 %541, %v113
        %v543 = vpop.permute.xlu0 %542
        %v544 = vlaneseq
        %v545 = vshrl.u32 %v544, 7
        %v546 = vadd.s32 %v545, 16
        %547 = vset.pattern.permute.xlu0 %v546
        %548 = vperm.xlu0 %547, %v126
        %v549 = vpop.permute.xlu0 %548
        %v550 = vlaneseq
        %v551 = vshrl.u32 %v550, 7
        %v552 = vadd.s32 %v551, 24
        %553 = vset.pattern.permute.xlu0 %v552
        %554 = vperm.xlu0 %553, %v126
        %v555 = vpop.permute.xlu0 %554
        %v556 = vlaneseq
        %v557 = vshrl.u32 %v556, 7
        %v558 = vadd.s32 %v557, 16
        %559 = vset.pattern.permute.xlu0 %v558
        %560 = vperm.xlu0 %559, %v139
        %v561 = vpop.permute.xlu0 %560
        %v562 = vlaneseq
        %v563 = vshrl.u32 %v562, 7
        %v564 = vadd.s32 %v563, 24
        %565 = vset.pattern.permute.xlu0 %v564
        %566 = vperm.xlu0 %565, %v139
        %v567 = vpop.permute.xlu0 %566
        %v568 = vlaneseq
        %v569 = vshrl.u32 %v568, 7
        %v570 = vadd.s32 %v569, 16
        %571 = vset.pattern.permute.xlu0 %v570
        %572 = vperm.xlu0 %571, %v152
        %v573 = vpop.permute.xlu0 %572
        %v574 = vlaneseq
        %v575 = vshrl.u32 %v574, 7
        %v576 = vadd.s32 %v575, 24
        %577 = vset.pattern.permute.xlu0 %v576
        %578 = vperm.xlu0 %577, %v152
        %v579 = vpop.permute.xlu0 %578
        %v580 = vlaneseq
        %v581 = vshrl.u32 %v580, 7
        %v582 = vadd.s32 %v581, 16
        %583 = vset.pattern.permute.xlu0 %v582
        %584 = vperm.xlu0 %583, %v165
        %v585 = vpop.permute.xlu0 %584
        %v586 = vlaneseq
        %v587 = vshrl.u32 %v586, 7
        %v588 = vadd.s32 %v587, 24
        %589 = vset.pattern.permute.xlu0 %v588
        %590 = vperm.xlu0 %589, %v165
        %v591 = vpop.permute.xlu0 %590
        %v592 = vlaneseq
        %v593 = vshrl.u32 %v592, 7
        %v594 = vadd.s32 %v593, 16
        %595 = vset.pattern.permute.xlu0 %v594
        %596 = vperm.xlu0 %595, %v178
        %v597 = vpop.permute.xlu0 %596
        %v598 = vlaneseq
        %v599 = vshrl.u32 %v598, 7
        %v600 = vadd.s32 %v599, 24
        %601 = vset.pattern.permute.xlu0 %v600
        %602 = vperm.xlu0 %601, %v178
        %v603 = vpop.permute.xlu0 %602
        %v604 = vlaneseq
        %v605 = vshrl.u32 %v604, 7
        %v606 = vadd.s32 %v605, 16
        %607 = vset.pattern.permute.xlu0 %v606
        %608 = vperm.xlu0 %607, %v191
        %v609 = vpop.permute.xlu0 %608
        %v610 = vlaneseq
        %v611 = vshrl.u32 %v610, 7
        %v612 = vadd.s32 %v611, 24
        %613 = vset.pattern.permute.xlu0 %v612
        %614 = vperm.xlu0 %613, %v191
        %v615 = vpop.permute.xlu0 %614
        %v616 = vlaneseq
        %v617 = vshrl.u32 %v616, 7
        %v618 = vadd.s32 %v617, 16
        %619 = vset.pattern.permute.xlu0 %v618
        %620 = vperm.xlu0 %619, %v204
        %v621 = vpop.permute.xlu0 %620
        %v622 = vlaneseq
        %v623 = vshrl.u32 %v622, 7
        %v624 = vadd.s32 %v623, 24
        %625 = vset.pattern.permute.xlu0 %v624
        %626 = vperm.xlu0 %625, %v204
        %v627 = vpop.permute.xlu0 %626
        %v628 = vrot.slane %v561, 4
        %v629 = vsel %vm218, %v628, %v537
        %v630 = vrot.slane %v537, 4
        %v631 = vsel %vm218, %v561, %v630
        %v633 = vunpack.c.l.s4 1983009808
        %v634 = vunpack.c.0.s8 %v633
        %v635 = vperm.slane %v629, %v634
        %v637 = vunpack.c.l.s4 1983009808
        %v638 = vunpack.c.0.s8 %v637
        %v639 = vperm.slane %v631, %v638
        %v640 = vrot.slane %v573, 4
        %v641 = vsel %vm218, %v640, %v549
        %v642 = vrot.slane %v549, 4
        %v643 = vsel %vm218, %v573, %v642
        %v645 = vunpack.c.l.s4 1983009808
        %v646 = vunpack.c.0.s8 %v645
        %v647 = vperm.slane %v641, %v646
        %v649 = vunpack.c.l.s4 1983009808
        %v650 = vunpack.c.0.s8 %v649
        %v651 = vperm.slane %v643, %v650
        %v652 = vrot.slane %v609, 4
        %v653 = vsel %vm218, %v652, %v585
        %v654 = vrot.slane %v585, 4
        %v655 = vsel %vm218, %v609, %v654
        %v657 = vunpack.c.l.s4 1983009808
        %v658 = vunpack.c.0.s8 %v657
        %v659 = vperm.slane %v653, %v658
        %v661 = vunpack.c.l.s4 1983009808
        %v662 = vunpack.c.0.s8 %v661
        %v663 = vperm.slane %v655, %v662
        %v664 = vrot.slane %v621, 4
        %v665 = vsel %vm218, %v664, %v597
        %v666 = vrot.slane %v597, 4
        %v667 = vsel %vm218, %v621, %v666
        %v669 = vunpack.c.l.s4 1983009808
        %v670 = vunpack.c.0.s8 %v669
        %v671 = vperm.slane %v665, %v670
        %v673 = vunpack.c.l.s4 1983009808
        %v674 = vunpack.c.0.s8 %v673
        %v675 = vperm.slane %v667, %v674
        %v676 = vrot.slane %v647, 4
        %v677 = vsel %vm218, %v676, %v635
        %v678 = vrot.slane %v635, 4
        %v679 = vsel %vm218, %v647, %v678
        %v681 = vunpack.c.l.s4 1934713408
        %v682 = vunpack.c.0.s8 %v681
        %v683 = vperm.slane %v677, %v682
        %v685 = vunpack.c.l.s4 1934713408
        %v686 = vunpack.c.0.s8 %v685
        %v687 = vperm.slane %v679, %v686
        %v688 = vrot.slane %v651, 4
        %v689 = vsel %vm218, %v688, %v639
        %v690 = vrot.slane %v639, 4
        %v691 = vsel %vm218, %v651, %v690
        %v693 = vunpack.c.l.s4 1934713408
        %v694 = vunpack.c.0.s8 %v693
        %v695 = vperm.slane %v689, %v694
        %v697 = vunpack.c.l.s4 1934713408
        %v698 = vunpack.c.0.s8 %v697
        %v699 = vperm.slane %v691, %v698
        %v700 = vrot.slane %v671, 4
        %v701 = vsel %vm218, %v700, %v659
        %v702 = vrot.slane %v659, 4
        %v703 = vsel %vm218, %v671, %v702
        %v705 = vunpack.c.l.s4 1934713408
        %v706 = vunpack.c.0.s8 %v705
        %v707 = vperm.slane %v701, %v706
        %v709 = vunpack.c.l.s4 1934713408
        %v710 = vunpack.c.0.s8 %v709
        %v711 = vperm.slane %v703, %v710
        %v712 = vrot.slane %v675, 4
        %v713 = vsel %vm218, %v712, %v663
        %v714 = vrot.slane %v663, 4
        %v715 = vsel %vm218, %v675, %v714
        %v717 = vunpack.c.l.s4 1934713408
        %v718 = vunpack.c.0.s8 %v717
        %v719 = vperm.slane %v713, %v718
        %v721 = vunpack.c.l.s4 1934713408
        %v722 = vunpack.c.0.s8 %v721
        %v723 = vperm.slane %v715, %v722
        %v724 = vrot.slane %v707, 4
        %v725 = vsel %vm218, %v724, %v683
        %v726 = vrot.slane %v683, 4
        %v727 = vsel %vm218, %v707, %v726
        %v728 = vrot.slane %v711, 4
        %v729 = vsel %vm218, %v728, %v687
        %v730 = vrot.slane %v687, 4
        %v731 = vsel %vm218, %v711, %v730
        %v732 = vrot.slane %v719, 4
        %v733 = vsel %vm218, %v732, %v695
        %v734 = vrot.slane %v695, 4
        %v735 = vsel %vm218, %v719, %v734
        %v736 = vrot.slane %v723, 4
        %v737 = vsel %vm218, %v736, %v699
        %v738 = vrot.slane %v699, 4
        %v739 = vsel %vm218, %v723, %v738
        %v740 = vrot.slane %v567, 4
        %v741 = vsel %vm218, %v740, %v543
        %v742 = vrot.slane %v543, 4
        %v743 = vsel %vm218, %v567, %v742
        %v745 = vunpack.c.l.s4 1983009808
        %v746 = vunpack.c.0.s8 %v745
        %v747 = vperm.slane %v741, %v746
        %v749 = vunpack.c.l.s4 1983009808
        %v750 = vunpack.c.0.s8 %v749
        %v751 = vperm.slane %v743, %v750
        %v752 = vrot.slane %v579, 4
        %v753 = vsel %vm218, %v752, %v555
        %v754 = vrot.slane %v555, 4
        %v755 = vsel %vm218, %v579, %v754
        %v757 = vunpack.c.l.s4 1983009808
        %v758 = vunpack.c.0.s8 %v757
        %v759 = vperm.slane %v753, %v758
        %v761 = vunpack.c.l.s4 1983009808
        %v762 = vunpack.c.0.s8 %v761
        %v763 = vperm.slane %v755, %v762
        %v764 = vrot.slane %v615, 4
        %v765 = vsel %vm218, %v764, %v591
        %v766 = vrot.slane %v591, 4
        %v767 = vsel %vm218, %v615, %v766
        %v769 = vunpack.c.l.s4 1983009808
        %v770 = vunpack.c.0.s8 %v769
        %v771 = vperm.slane %v765, %v770
        %v773 = vunpack.c.l.s4 1983009808
        %v774 = vunpack.c.0.s8 %v773
        %v775 = vperm.slane %v767, %v774
        %v776 = vrot.slane %v627, 4
        %v777 = vsel %vm218, %v776, %v603
        %v778 = vrot.slane %v603, 4
        %v779 = vsel %vm218, %v627, %v778
        %v781 = vunpack.c.l.s4 1983009808
        %v782 = vunpack.c.0.s8 %v781
        %v783 = vperm.slane %v777, %v782
        %v785 = vunpack.c.l.s4 1983009808
        %v786 = vunpack.c.0.s8 %v785
        %v787 = vperm.slane %v779, %v786
        %v788 = vrot.slane %v759, 4
        %v789 = vsel %vm218, %v788, %v747
        %v790 = vrot.slane %v747, 4
        %v791 = vsel %vm218, %v759, %v790
        %v793 = vunpack.c.l.s4 1934713408
        %v794 = vunpack.c.0.s8 %v793
        %v795 = vperm.slane %v789, %v794
        %v797 = vunpack.c.l.s4 1934713408
        %v798 = vunpack.c.0.s8 %v797
        %v799 = vperm.slane %v791, %v798
        %v800 = vrot.slane %v763, 4
        %v801 = vsel %vm218, %v800, %v751
        %v802 = vrot.slane %v751, 4
        %v803 = vsel %vm218, %v763, %v802
        %v805 = vunpack.c.l.s4 1934713408
        %v806 = vunpack.c.0.s8 %v805
        %v807 = vperm.slane %v801, %v806
        %v809 = vunpack.c.l.s4 1934713408
        %v810 = vunpack.c.0.s8 %v809
        %v811 = vperm.slane %v803, %v810
        %v812 = vrot.slane %v783, 4
        %v813 = vsel %vm218, %v812, %v771
        %v814 = vrot.slane %v771, 4
        %v815 = vsel %vm218, %v783, %v814
        %v817 = vunpack.c.l.s4 1934713408
        %v818 = vunpack.c.0.s8 %v817
        %v819 = vperm.slane %v813, %v818
        %v821 = vunpack.c.l.s4 1934713408
        %v822 = vunpack.c.0.s8 %v821
        %v823 = vperm.slane %v815, %v822
        %v824 = vrot.slane %v787, 4
        %v825 = vsel %vm218, %v824, %v775
        %v826 = vrot.slane %v775, 4
        %v827 = vsel %vm218, %v787, %v826
        %v829 = vunpack.c.l.s4 1934713408
        %v830 = vunpack.c.0.s8 %v829
        %v831 = vperm.slane %v825, %v830
        %v833 = vunpack.c.l.s4 1934713408
        %v834 = vunpack.c.0.s8 %v833
        %v835 = vperm.slane %v827, %v834
        %v836 = vrot.slane %v819, 4
        %v837 = vsel %vm218, %v836, %v795
        %v838 = vrot.slane %v795, 4
        %v839 = vsel %vm218, %v819, %v838
        %v840 = vrot.slane %v823, 4
        %v841 = vsel %vm218, %v840, %v799
        %v842 = vrot.slane %v799, 4
        %v843 = vsel %vm218, %v823, %v842
        %v844 = vrot.slane %v831, 4
        %v845 = vsel %vm218, %v844, %v807
        %v846 = vrot.slane %v807, 4
        %v847 = vsel %vm218, %v831, %v846
        %v848 = vrot.slane %v835, 4
        %v849 = vsel %vm218, %v848, %v811
        %v850 = vrot.slane %v811, 4
        %v851 = vsel %vm218, %v835, %v850
        %853 = vrot.lane.b32.xlu0 %v727, 2
        %v854 = vpop.permute.xlu0 %853
        %857 = vrot.lane.b32.xlu0 %v729, 4
        %v858 = vpop.permute.xlu0 %857
        %861 = vrot.lane.b32.xlu0 %v731, 6
        %v862 = vpop.permute.xlu0 %861
        %865 = vrot.lane.b32.xlu0 %v733, 8
        %v866 = vpop.permute.xlu0 %865
        %869 = vrot.lane.b32.xlu0 %v735, 10
        %v870 = vpop.permute.xlu0 %869
        %873 = vrot.lane.b32.xlu0 %v737, 12
        %v874 = vpop.permute.xlu0 %873
        %877 = vrot.lane.b32.xlu0 %v739, 14
        %v878 = vpop.permute.xlu0 %877
        %881 = vrot.lane.b32.xlu0 %v837, 16
        %v882 = vpop.permute.xlu0 %881
        %885 = vrot.lane.b32.xlu0 %v839, 18
        %v886 = vpop.permute.xlu0 %885
        %889 = vrot.lane.b32.xlu0 %v841, 20
        %v890 = vpop.permute.xlu0 %889
        %893 = vrot.lane.b32.xlu0 %v843, 22
        %v894 = vpop.permute.xlu0 %893
        %897 = vrot.lane.b32.xlu0 %v845, 24
        %v898 = vpop.permute.xlu0 %897
        %901 = vrot.lane.b32.xlu0 %v847, 26
        %v902 = vpop.permute.xlu0 %901
        %905 = vrot.lane.b32.xlu0 %v849, 28
        %v906 = vpop.permute.xlu0 %905
        %909 = vrot.lane.b32.xlu0 %v851, 30
        %v910 = vpop.permute.xlu0 %909
        %v912 = vsel %vm502, %v725, %v854
        %v913 = vsel %vm504, %v912, %v858
        %v914 = vsel %vm506, %v913, %v862
        %v915 = vsel %vm508, %v914, %v866
        %v916 = vsel %vm510, %v915, %v870
        %v917 = vsel %vm512, %v916, %v874
        %v918 = vsel %vm514, %v917, %v878
        %v919 = vsel %vm516, %v918, %v882
        %v920 = vsel %vm518, %v919, %v886
        %v921 = vsel %vm520, %v920, %v890
        %v922 = vsel %vm522, %v921, %v894
        %v923 = vsel %vm524, %v922, %v898
        %v924 = vsel %vm526, %v923, %v902
        %v925 = vsel %vm528, %v924, %v906
        %v926 = vsel %vm530, %v925, %v910
        %928 = vrot.lane.b32.xlu0 %v531, 32
        %v929 = vpop.permute.xlu0 %928
        %932 = vrot.lane.b32.xlu0 %v926, 64
        %v933 = vpop.permute.xlu0 %932
        %935 = vrot.lane.b32.xlu0 %v926, 96
        %v936 = vpop.permute.xlu0 %935
        %vm938 = vcmask 261120
        %v939 = vsel %vm938, %v531, %v929
        %vm940 = vcmask 523264
        %v941 = vsel %vm940, %v939, %v933
        %vm942 = vcmask 785408
        %v943 = vsel %vm942, %v941, %v936
        %944 = vst [vmem:[%s107] sm:$0xff] %v943
        %s945 = sand.u32 %s49, 1
        %s946 = scalar_lea.sflag [#allocation3], %s945
        %s947 = sand.u32 %s49, 1
        %s948 = smul.addr %s947, 8
        %s949 = scalar_lea.vmem [#allocation2], %s948
        // Predicated region
        $region25: #{tpu_custom_call.1} parent=23 // pred_check
          %p950 = pneg %p59
        $region26: #{tpu_custom_call.1} parent=23 // pred_check_branch
          %952 = sbr.rel (%p950) target = $region28
        $region27: #{tpu_custom_call.1} parent=23 // pred_region
          %954 = vsyncadd %s946, 0
          %s955 = smul.addr %s15, 8
          %s956 = scalar_lea.hbm %s1, %s955
          %s958 = sshll.u32 %s949, 4
          %s959 = int_to_ptr.vmem [resolvable:$true] %s958
          %s960 = sshll.u32 %s956, 4
          %s961 = int_to_ptr.hbm [resolvable:$true] %s960
          %963 = dma.vmem_to_hbm [thread:$0]  %s959, 128, %s961, %s946
        $region28: #{tpu_custom_call.1} parent=23 // pred_fallthru
          _
      $region24: #{tpu_custom_call.1} parent=5 // pred_fallthru
        _
      %p964 = scmp.le.s32.totalorder 2, %s10
      // Predicated region
      $region29: #{tpu_custom_call.1} parent=5 // pred_check
        %p965 = pneg %p964
      $region30: #{tpu_custom_call.1} parent=5 // pred_check_branch
        %967 = sbr.rel (%p965) target = $region32
      $region31: #{tpu_custom_call.1} parent=5 // pred_region
        %s968 = ssub.s32 %s10, 2
        // Predicated region
        $region33: #{tpu_custom_call.1} parent=31 // pred_check
          %p969 = pneg %p65
        $region34: #{tpu_custom_call.1} parent=31 // pred_check_branch
          %971 = sbr.rel (%p969) target = $region36
        $region35: #{tpu_custom_call.1} parent=31 // pred_region
          %s972 = sand.u32 %s50, 1
          %s973 = scalar_lea.sflag [#allocation3], %s972
          %s974 = sand.u32 %s50, 1
          %s975 = smul.addr %s974, 8
          %s976 = scalar_lea.vmem [#allocation2], %s975
          %978 = dma.done %s973, 128
        $region36: #{tpu_custom_call.1} parent=31 // pred_fallthru
          _
      $region32: #{tpu_custom_call.1} parent=5 // pred_fallthru
        _
    $region6: #{tpu_custom_call.1} parent=1 // loop_footer
      %s14 = sadd.s32 1, %s10
    $region7: #{tpu_custom_call.1} parent=1 // loop_footer_branch
      %9 = sbr.rel target = $region3
    $region8: #{tpu_custom_call.1} parent=1 // loop_exit
      _
    %979 = vsyncpa [#allocation3], 1
    %s980 = scalar_lea.sflag [#allocation3], 1
    %981 = vsyncpa %s980, 1

</llo_original>
